<compile_context>
chip_gen: v5e
topology: v5e:2x2
jax: 0.10.0
libtpu: 0.0.40
codegen_flags: <defaults>
</compile_context>

<pallas_src>
import jax
import jax.numpy as jnp
from jax.experimental import pallas as pl
from jax.experimental.pallas import tpu as pltpu


def _round_up(x, m):
    return (x + m - 1) // m * m


# ----------------------------------------------------------------------------
# Kernels
# ----------------------------------------------------------------------------
def core_step_kernel(g_ref, h_ref, wg_ref, wh_ref, out_ref):
    """Single cell step: relu(g @ Wg + h @ Wh); bias is baked into Wg."""
    acc = jnp.dot(g_ref[...], wg_ref[...], preferred_element_type=jnp.float32)
    acc += jnp.dot(h_ref[...], wh_ref[...], preferred_element_type=jnp.float32)
    out_ref[...] = jnp.maximum(acc, 0.0).astype(out_ref.dtype)


def core_rollout_kernel(g_ref, h0_ref, wg_ref, wh_ref, out_ref, h_scratch):
    """T-step recurrence folded into grid=(T,).

    Weights + h0 are VMEM-resident (constant index_map); the carried hidden
    state stays in an f32 VMEM scratch across grid steps (never hits HBM and
    is never rounded to the compute dtype between steps).
    """
    t = pl.program_id(0)

    @pl.when(t == 0)
    def _():
        h_scratch[...] = h0_ref[...].astype(jnp.float32)

    acc = jnp.dot(g_ref[0], wg_ref[...], preferred_element_type=jnp.float32)
    acc += jnp.dot(h_scratch[...].astype(wh_ref.dtype), wh_ref[...],
                   preferred_element_type=jnp.float32)
    h_new = jnp.maximum(acc, 0.0)
    h_scratch[...] = h_new
    out_ref[0] = h_new.astype(out_ref.dtype)


# ----------------------------------------------------------------------------
# One-time parameter fusion + padding (weights static across timesteps).
# ----------------------------------------------------------------------------
def prepare_params(w_i2h, b_i2h, w_h2h, b_h2h, compute_dtype=jnp.float32):
    """w_i2h: (input, hidden), w_h2h: (hidden, hidden) — torch weights transposed.

    Returns
      wg: (G_pad, H_pad)  [W_i2h ; (b_i2h + b_h2h) ; zeros], zero-padded
      wh: (H_pad, H_pad)  [W_h2h ; zeros], zero-padded
    The bias is baked into wg as one extra K row; the glimpse input must carry
    a 1.0 column at index `input_size` (done by `_pad_glimpse`).
    """
    input_size, hidden_size = w_i2h.shape
    g_pad = _round_up(input_size + 1, 128)   # +1 for the baked bias row
    h_pad = _round_up(hidden_size, 128)

    b = (b_i2h + b_h2h).reshape(1, hidden_size)
    wg = jnp.concatenate([w_i2h, b], axis=0)                        # (input+1, H)
    wg = jnp.pad(wg, ((0, g_pad - (input_size + 1)), (0, h_pad - hidden_size)))
    wh = jnp.pad(w_h2h, ((0, h_pad - hidden_size), (0, h_pad - hidden_size)))
    return wg.astype(compute_dtype), wh.astype(compute_dtype)


def _pad_glimpse(g, g_pad, compute_dtype):
    """(..., B, input) -> (..., B_pad, G_pad) with a 1.0 bias column appended."""
    *lead, b, gdim = g.shape
    b_pad = _round_up(b, 8)
    ones = jnp.ones((*lead, b, 1), g.dtype)
    x = jnp.concatenate([g, ones], axis=-1)
    pad = [(0, 0)] * len(lead) + [(0, b_pad - b), (0, g_pad - (gdim + 1))]
    return jnp.pad(x, pad).astype(compute_dtype)


def _pad_hidden(h, h_pad, compute_dtype):
    b, hidden = h.shape
    b_pad = _round_up(b, 8)
    return jnp.pad(h, ((0, b_pad - b), (0, h_pad - hidden))).astype(compute_dtype)


# ----------------------------------------------------------------------------
# Single-step forward (matches CoreNetwork.forward exactly).
# ----------------------------------------------------------------------------
def core_network_forward(g_t, h_t_prev, wg, wh, compute_dtype=jnp.float32):
    """g_t: (B, input), h_t_prev: (B, hidden) -> h_t: (B, hidden) f32."""
    b = g_t.shape[0]
    hidden = h_t_prev.shape[1]
    g_pad_dim, h_pad_dim = wg.shape[0], wg.shape[1]
    b_pad = _round_up(b, 8)

    x = _pad_glimpse(g_t, g_pad_dim, compute_dtype)
    h = _pad_hidden(h_t_prev, h_pad_dim, compute_dtype)

    full = lambda shape: pl.BlockSpec(shape, lambda: (0,) * len(shape))
    out = pl.pallas_call(
        core_step_kernel,
        out_shape=jax.ShapeDtypeStruct((b_pad, h_pad_dim), jnp.float32),
        grid=(),  # single program: whole padded problem in one VMEM tile
        in_specs=[full(x.shape), full(h.shape), full(wg.shape), full(wh.shape)],
        out_specs=full((b_pad, h_pad_dim)),
    )(x, h, wg, wh)
    return out[:b, :hidden]


# ----------------------------------------------------------------------------
# Folded T-step rollout: one pallas_call for the whole recurrence.
# ----------------------------------------------------------------------------
def core_network_rollout(glimpses, h0, wg, wh, compute_dtype=jnp.float32):
    """glimpses: (T, B, input), h0: (B, hidden) -> all hidden states (T, B, hidden) f32."""
    t_steps, b, _ = glimpses.shape
    hidden = h0.shape[1]
    g_pad_dim, h_pad_dim = wg.shape[0], wg.shape[1]
    b_pad = _round_up(b, 8)

    # Pad once for the whole sequence (not per step).
    x = _pad_glimpse(glimpses, g_pad_dim, compute_dtype)     # (T, B_pad, G_pad)
    h0p = _pad_hidden(h0, h_pad_dim, compute_dtype)          # (B_pad, H_pad)

    grid_spec = pltpu.PrefetchScalarGridSpec(
        num_scalar_prefetch=0,
        grid=(t_steps,),
        in_specs=[
            pl.BlockSpec((1, b_pad, g_pad_dim), lambda t: (t, 0, 0)),  # streamed
            pl.BlockSpec((b_pad, h_pad_dim), lambda t: (0, 0)),        # resident
            pl.BlockSpec((g_pad_dim, h_pad_dim), lambda t: (0, 0)),    # resident
            pl.BlockSpec((h_pad_dim, h_pad_dim), lambda t: (0, 0)),    # resident
        ],
        out_specs=pl.BlockSpec((1, b_pad, h_pad_dim), lambda t: (t, 0, 0)),
        scratch_shapes=[pltpu.VMEM((b_pad, h_pad_dim), jnp.float32)],  # carried h
    )
    out = pl.pallas_call(
        core_rollout_kernel,
        out_shape=jax.ShapeDtypeStruct((t_steps, b_pad, h_pad_dim), jnp.float32),
        grid_spec=grid_spec,
        compiler_params=pltpu.CompilerParams(
            dimension_semantics=("arbitrary",)),  # recurrence => sequential
    )(x, h0p, wg, wh)

    # Slice the real result back out exactly once, after the whole sequence.
    return out[:, :b, :hidden]


# ----------------------------------------------------------------------------
# Deterministic init mimicking nn.Linear's U(-1/sqrt(fan_in), 1/sqrt(fan_in)).
# ----------------------------------------------------------------------------
def init_params(key, input_size, hidden_size):
    k1, k2, k3, k4 = jax.random.split(key, 4)
    bound_i = 1.0 / jnp.sqrt(input_size)
    bound_h = 1.0 / jnp.sqrt(hidden_size)
    # Stored as (in_features, out_features) — i.e. torch weight transposed.
    w_i2h = jax.random.uniform(k1, (input_size, hidden_size), jnp.float32,
                               -bound_i, bound_i)
    b_i2h = jax.random.uniform(k2, (1, hidden_size), jnp.float32, -bound_i, bound_i)
    w_h2h = jax.random.uniform(k3, (hidden_size, hidden_size), jnp.float32,
                               -bound_h, bound_h)
    b_h2h = jax.random.uniform(k4, (1, hidden_size), jnp.float32, -bound_h, bound_h)
    return w_i2h, b_i2h, w_h2h, b_h2h


if __name__ == "__main__":
    B = 2
    input_size = 32
    hidden_size = 32
    T = 8

    key = jax.random.PRNGKey(0)
    kp, kg, kh, ks = jax.random.split(key, 4)

    w_i2h, b_i2h, w_h2h, b_h2h = init_params(kp, input_size, hidden_size)
    g_t = jax.random.normal(kg, (B, input_size), jnp.float32)
    h_t_prev = jax.random.normal(kh, (B, hidden_size), jnp.float32)
    glimpses = jax.random.normal(ks, (T, B, input_size), jnp.float32)

    # --- single-step cell (module.forward semantics), f32 ---
    wg32, wh32 = prepare_params(w_i2h, b_i2h, w_h2h, b_h2h, jnp.float32)
    h_t = core_network_forward(g_t, h_t_prev, wg32, wh32)
    h_t = jax.block_until_ready(h_t)
    ref_step = jnp.maximum(g_t @ w_i2h + b_i2h + h_t_prev @ w_h2h + b_h2h, 0.0)
    assert h_t.shape == (B, hidden_size)
    assert jnp.allclose(h_t, ref_step, atol=1e-5, rtol=1e-5)

    # --- folded T-step rollout (one pallas_call for the whole recurrence), f32 ---
    def _ref_rollout(gs, h0):
        def step(h, g):
            h_new = jnp.maximum(g @ w_i2h + b_i2h + h @ w_h2h + b_h2h, 0.0)
            return h_new, h_new
        _, hs = jax.lax.scan(step, h0, gs)
        return hs

    hs = core_network_rollout(glimpses, h_t_prev, wg32, wh32)
    hs = jax.block_until_ready(hs)
    ref_roll = _ref_rollout(glimpses, h_t_prev)
    assert hs.shape == (T, B, hidden_size)
    assert jnp.allclose(hs, ref_roll, atol=1e-4, rtol=1e-4)

    # --- bf16 compute (v6e/v7x DMA/vreg savings); f32 carry, loose tolerance ---
    wg16, wh16 = prepare_params(w_i2h, b_i2h, w_h2h, b_h2h, jnp.bfloat16)
    hs_bf16 = core_network_rollout(glimpses, h_t_prev, wg16, wh16,
                                   compute_dtype=jnp.bfloat16)
    hs_bf16 = jax.block_until_ready(hs_bf16)
    assert jnp.allclose(hs_bf16, ref_roll, atol=1e-1, rtol=1e-1)

    print("KERNEL_OK")
</pallas_src>

<mosaic_0001>
module attributes {stable_mosaic.version = 11 : i64} {
  func.func @core_step_kernel(%arg0: memref<8x128xf32, #tpu.memory_space<vmem>>, %arg1: memref<8x128xf32, #tpu.memory_space<vmem>>, %arg2: memref<128x128xf32, #tpu.memory_space<vmem>>, %arg3: memref<128x128xf32, #tpu.memory_space<vmem>>, %arg4: memref<8x128xf32, #tpu.memory_space<vmem>>) attributes {dimension_semantics = [], scalar_prefetch = 0 : i64, scratch_operands = 0 : i64, tpu.core_type = #tpu.core_type<tc>} {
    %c0 = arith.constant 0 : index
    %c0_0 = arith.constant 0 : index
    %0 = vector.load %arg0[%c0, %c0_0] : memref<8x128xf32, #tpu.memory_space<vmem>>, vector<8x128xf32>
    %c0_1 = arith.constant 0 : index
    %c0_2 = arith.constant 0 : index
    %1 = vector.load %arg2[%c0_1, %c0_2] : memref<128x128xf32, #tpu.memory_space<vmem>>, vector<128x128xf32>
    %cst = arith.constant dense<0.000000e+00> : vector<8x128xf32>
    %2 = tpu.matmul %0, %1, %cst {dimension_numbers = #tpu.dot_dimension_numbers<[1], [0], [0], [1], [0, 0, 1, 1], [], []>} : vector<8x128xf32>, vector<128x128xf32>, vector<8x128xf32> -> vector<8x128xf32>
    %c0_3 = arith.constant 0 : index
    %c0_4 = arith.constant 0 : index
    %3 = vector.load %arg1[%c0_3, %c0_4] : memref<8x128xf32, #tpu.memory_space<vmem>>, vector<8x128xf32>
    %c0_5 = arith.constant 0 : index
    %c0_6 = arith.constant 0 : index
    %4 = vector.load %arg3[%c0_5, %c0_6] : memref<128x128xf32, #tpu.memory_space<vmem>>, vector<128x128xf32>
    %cst_7 = arith.constant dense<0.000000e+00> : vector<8x128xf32>
    %5 = tpu.matmul %3, %4, %cst_7 {dimension_numbers = #tpu.dot_dimension_numbers<[1], [0], [0], [1], [0, 0, 1, 1], [], []>} : vector<8x128xf32>, vector<128x128xf32>, vector<8x128xf32> -> vector<8x128xf32>
    %6 = arith.addf %2, %5 : vector<8x128xf32>
    %cst_8 = arith.constant 0.000000e+00 : f32
    %7 = vector.broadcast %cst_8 : f32 to vector<8x128xf32>
    %8 = arith.maximumf %6, %7 : vector<8x128xf32>
    %c0_9 = arith.constant 0 : index
    %c0_10 = arith.constant 0 : index
    %9 = vector.load %arg4[%c0_9, %c0_10] : memref<8x128xf32, #tpu.memory_space<vmem>>, vector<8x128xf32>
    tpu.vector_store %arg4[%c0_9, %c0_10], %8 {strides = array<i32>} : memref<8x128xf32, #tpu.memory_space<vmem>>, vector<8x128xf32>,
    return
  }
}

</mosaic_0001>

<llo_original>
// kernel: tpu_custom_call.1
$region0: #{tpu_custom_call.1}
  #allocation0 [shape = 'u32[]', space=smem, size = 0x4, offset = 0x4, fixed_abs, tag = 'smem constant byte address 0x4 - core index']
  #allocation1 [shape = 'u32[72,128]{1,0:T(1,128)}', space=vmem, size = 0x9000, scoped, tag = 'internal scratch']
  %s0 = inlined_call_operand.hbm [shape: f32[8,128], index: 0, kind: input, shape index: {}]
  %s1 = inlined_call_operand.hbm [shape: f32[8,128], index: 1, kind: input, shape index: {}]
  %s2 = inlined_call_operand.hbm [shape: f32[128,128], index: 2, kind: input, shape index: {}]
  %s3 = inlined_call_operand.hbm [shape: f32[128,128], index: 3, kind: input, shape index: {}]
  %s4 = inlined_call_operand.hbm [shape: f32[8,128], index: 4, kind: output, shape index: {}]
  %s5 = sld [smem:[#allocation0]]
  $region42: #{tpu_custom_call.1} parent=0
    _
  %s7 = ssub.s32 1, %s5
  %s8 = scalar_select 0, %s7, %s5
  $region1: #{tpu_custom_call.1} parent=0
    #allocation2 [shape = 'u8[4096]{0}', space=vmem, size = 0x1000, scoped, tag = 'input window, operand 0, single buffered']
    #allocation3 [shape = 's32[1]{0}', space=sflag, size = 0x4, scoped, tag = 'scoped memory for tpu_custom_call.1']
    #allocation4 [shape = 's32[1]{0}', space=sflag, size = 0x4, scoped, tag = 'scoped memory for tpu_custom_call.1']
    #allocation5 [shape = 'u8[4096]{0}', space=vmem, size = 0x1000, scoped, tag = 'input window, operand 1, single buffered']
    #allocation6 [shape = 's32[1]{0}', space=sflag, size = 0x4, scoped, tag = 'scoped memory for tpu_custom_call.1']
    #allocation7 [shape = 'u8[65536]{0}', space=vmem, size = 0x10000, scoped, tag = 'input window, operand 2, single buffered']
    #allocation8 [shape = 'u8[65536]{0}', space=vmem, size = 0x10000, scoped, tag = 'input window, operand 3, single buffered']
    #allocation9 [shape = 's32[1]{0}', space=sflag, size = 0x4, scoped, tag = 'scoped memory for tpu_custom_call.1']
    #allocation10 [shape = 'u8[4096]{0}', space=vmem, size = 0x1000, scoped, tag = 'output window, operand 0, single buffered']
    %9 = vsyncpa [#allocation3], 0
    %10 = vsyncpa [#allocation6], 0
    %11 = vsyncpa [#allocation9], 0
    %12 = vsyncpa [#allocation4], 0
    // Predicated region
    $region2: #{tpu_custom_call.1} parent=1 // pred_check
      _
    $region3: #{tpu_custom_call.1} parent=1 // pred_check_branch
      %14 = sbr.rel (0) target = $region5
    $region4: #{tpu_custom_call.1} parent=1 // pred_region
      %16 = vsyncadd [#allocation3], 0
      %s18 = sshll.u32 %s0, 4
      %s19 = int_to_ptr.hbm [resolvable:$true] %s18
      %s20 = sshll.u32 [#allocation2], 4
      %s21 = int_to_ptr.vmem [resolvable:$true] %s20
      %23 = dma.hbm_to_vmem [thread:$0]  %s19, 128, %s21, [#allocation3]
    $region5: #{tpu_custom_call.1} parent=1 // pred_fallthru
      _
    // Predicated region
    $region6: #{tpu_custom_call.1} parent=1 // pred_check
      _
    $region7: #{tpu_custom_call.1} parent=1 // pred_check_branch
      %25 = sbr.rel (0) target = $region9
    $region8: #{tpu_custom_call.1} parent=1 // pred_region
      %27 = vsyncadd [#allocation6], 0
      %s29 = sshll.u32 %s1, 4
      %s30 = int_to_ptr.hbm [resolvable:$true] %s29
      %s31 = sshll.u32 [#allocation5], 4
      %s32 = int_to_ptr.vmem [resolvable:$true] %s31
      %34 = dma.hbm_to_vmem [thread:$0]  %s30, 128, %s32, [#allocation6]
    $region9: #{tpu_custom_call.1} parent=1 // pred_fallthru
      _
    // Predicated region
    $region10: #{tpu_custom_call.1} parent=1 // pred_check
      _
    $region11: #{tpu_custom_call.1} parent=1 // pred_check_branch
      %36 = sbr.rel (0) target = $region13
    $region12: #{tpu_custom_call.1} parent=1 // pred_region
      %38 = vsyncadd [#allocation6], 0
      %s39 = sshll.u32 %s2, 4
      %s40 = int_to_ptr.hbm [resolvable:$true] %s39
      %s41 = sshll.u32 [#allocation7], 4
      %s42 = int_to_ptr.vmem [resolvable:$true] %s41
      %47 = dma.hbm_to_vmem [thread:$0]  %s40, 2048, %s42, [#allocation6], 128, 128, 8
    $region13: #{tpu_custom_call.1} parent=1 // pred_fallthru
      _
    // Predicated region
    $region14: #{tpu_custom_call.1} parent=1 // pred_check
      _
    $region15: #{tpu_custom_call.1} parent=1 // pred_check_branch
      %49 = sbr.rel (0) target = $region17
    $region16: #{tpu_custom_call.1} parent=1 // pred_region
      %51 = vsyncadd [#allocation9], 0
      %s52 = sshll.u32 %s3, 4
      %s53 = int_to_ptr.hbm [resolvable:$true] %s52
      %s54 = sshll.u32 [#allocation8], 4
      %s55 = int_to_ptr.vmem [resolvable:$true] %s54
      %60 = dma.hbm_to_vmem [thread:$0]  %s53, 2048, %s55, [#allocation9], 128, 128, 8
    $region17: #{tpu_custom_call.1} parent=1 // pred_fallthru
      _
    // Predicated region
    $region18: #{tpu_custom_call.1} parent=1 // pred_check
      _
    $region19: #{tpu_custom_call.1} parent=1 // pred_check_branch
      %62 = sbr.rel (0) target = $region21
    $region20: #{tpu_custom_call.1} parent=1 // pred_region
      %64 = dma.done [#allocation3], 128
    $region21: #{tpu_custom_call.1} parent=1 // pred_fallthru
      _
    // Predicated region
    $region22: #{tpu_custom_call.1} parent=1 // pred_check
      _
    $region23: #{tpu_custom_call.1} parent=1 // pred_check_branch
      %66 = sbr.rel (0) target = $region25
    $region24: #{tpu_custom_call.1} parent=1 // pred_region
      %68 = dma.done [#allocation6], 128
    $region25: #{tpu_custom_call.1} parent=1 // pred_fallthru
      _
    // Predicated region
    $region26: #{tpu_custom_call.1} parent=1 // pred_check
      _
    $region27: #{tpu_custom_call.1} parent=1 // pred_check_branch
      %70 = sbr.rel (0) target = $region29
    $region28: #{tpu_custom_call.1} parent=1 // pred_region
      %72 = dma.done [#allocation6], 2048
    $region29: #{tpu_custom_call.1} parent=1 // pred_fallthru
      _
    // Predicated region
    $region30: #{tpu_custom_call.1} parent=1 // pred_check
      _
    $region31: #{tpu_custom_call.1} parent=1 // pred_check_branch
      %74 = sbr.rel (0) target = $region33
    $region32: #{tpu_custom_call.1} parent=1 // pred_region
      %76 = dma.done [#allocation9], 2048
    $region33: #{tpu_custom_call.1} parent=1 // pred_fallthru
      _
    %v77 = vld [vmem:[#allocation2] sm:$0xff]
    %v78 = vld [vmem:[#allocation7] sm:$0xff]
    %v79 = vld [vmem:[#allocation7 + $0x8] sm:$0xff]
    %v80 = vld [vmem:[#allocation7 + $0x10] sm:$0xff]
    %v81 = vld [vmem:[#allocation7 + $0x18] sm:$0xff]
    %v82 = vld [vmem:[#allocation7 + $0x20] sm:$0xff]
    %v83 = vld [vmem:[#allocation7 + $0x28] sm:$0xff]
    %v84 = vld [vmem:[#allocation7 + $0x30] sm:$0xff]
    %v85 = vld [vmem:[#allocation7 + $0x38] sm:$0xff]
    %v86 = vld [vmem:[#allocation7 + $0x40] sm:$0xff]
    %v87 = vld [vmem:[#allocation7 + $0x48] sm:$0xff]
    %v88 = vld [vmem:[#allocation7 + $0x50] sm:$0xff]
    %v89 = vld [vmem:[#allocation7 + $0x58] sm:$0xff]
    %v90 = vld [vmem:[#allocation7 + $0x60] sm:$0xff]
    %v91 = vld [vmem:[#allocation7 + $0x68] sm:$0xff]
    %v92 = vld [vmem:[#allocation7 + $0x70] sm:$0xff]
    %v93 = vld [vmem:[#allocation7 + $0x78] sm:$0xff]
    %v94 = vld [vmem:[#allocation5] sm:$0xff]
    %v95 = vld [vmem:[#allocation8] sm:$0xff]
    %v96 = vld [vmem:[#allocation8 + $0x8] sm:$0xff]
    %v97 = vld [vmem:[#allocation8 + $0x10] sm:$0xff]
    %v98 = vld [vmem:[#allocation8 + $0x18] sm:$0xff]
    %v99 = vld [vmem:[#allocation8 + $0x20] sm:$0xff]
    %v100 = vld [vmem:[#allocation8 + $0x28] sm:$0xff]
    %v101 = vld [vmem:[#allocation8 + $0x30] sm:$0xff]
    %v102 = vld [vmem:[#allocation8 + $0x38] sm:$0xff]
    %v103 = vld [vmem:[#allocation8 + $0x40] sm:$0xff]
    %v104 = vld [vmem:[#allocation8 + $0x48] sm:$0xff]
    %v105 = vld [vmem:[#allocation8 + $0x50] sm:$0xff]
    %v106 = vld [vmem:[#allocation8 + $0x58] sm:$0xff]
    %v107 = vld [vmem:[#allocation8 + $0x60] sm:$0xff]
    %v108 = vld [vmem:[#allocation8 + $0x68] sm:$0xff]
    %v109 = vld [vmem:[#allocation8 + $0x70] sm:$0xff]
    %v110 = vld [vmem:[#allocation8 + $0x78] sm:$0xff]
    %111 = vmatpush.msra.mxu0 %v110
    %112 = vmatpush.msra.mxu0 %v109
    %113 = vmatpush.msra.mxu0 %v108
    %114 = vmatpush.msra.mxu0 %v107
    %115 = vmatpush.msra.mxu0 %v106
    %116 = vmatpush.msra.mxu0 %v105
    %117 = vmatpush.msra.mxu0 %v104
    %118 = vmatpush.msra.mxu0 %v103
    %119 = vmatpush.msra.mxu0 %v102
    %120 = vmatpush.msra.mxu0 %v101
    %121 = vmatpush.msra.mxu0 %v100
    %122 = vmatpush.msra.mxu0 %v99
    %123 = vmatpush.msra.mxu0 %v98
    %124 = vmatpush.msra.mxu0 %v97
    %125 = vmatpush.msra.mxu0 %v96
    %126 = vmatpush.msra.mxu0 %v95
    %127 = vmatmul.f32.gmra.mxu0 %v94
    %v128 = vpop.f32.mrf.mxu0
    %v129 = vadd.f32 0.0, %v128
    %130 = vdwg.mxu0
    %131 = vmatpush.msra.mxu0 %v93
    %132 = vmatpush.msra.mxu0 %v92
    %133 = vmatpush.msra.mxu0 %v91
    %134 = vmatpush.msra.mxu0 %v90
    %135 = vmatpush.msra.mxu0 %v89
    %136 = vmatpush.msra.mxu0 %v88
    %137 = vmatpush.msra.mxu0 %v87
    %138 = vmatpush.msra.mxu0 %v86
    %139 = vmatpush.msra.mxu0 %v85
    %140 = vmatpush.msra.mxu0 %v84
    %141 = vmatpush.msra.mxu0 %v83
    %142 = vmatpush.msra.mxu0 %v82
    %143 = vmatpush.msra.mxu0 %v81
    %144 = vmatpush.msra.mxu0 %v80
    %145 = vmatpush.msra.mxu0 %v79
    %146 = vmatpush.msra.mxu0 %v78
    %147 = vmatmul.f32.gmra.mxu0 %v77
    %v148 = vpop.f32.mrf.mxu0
    %v149 = vadd.f32 %v129, %v148
    %150 = vdwg.mxu0
    %v151 = vmax.f32 %v149, 0.0
    %152 = vst [vmem:[#allocation10] sm:$0xff] %v151
    // Predicated region
    $region34: #{tpu_custom_call.1} parent=1 // pred_check
      _
    $region35: #{tpu_custom_call.1} parent=1 // pred_check_branch
      %154 = sbr.rel (0) target = $region37
    $region36: #{tpu_custom_call.1} parent=1 // pred_region
      %156 = vsyncadd [#allocation4], 0
      %s158 = sshll.u32 [#allocation10], 4
      %s159 = int_to_ptr.vmem [resolvable:$true] %s158
      %s160 = sshll.u32 %s4, 4
      %s161 = int_to_ptr.hbm [resolvable:$true] %s160
      %163 = dma.vmem_to_hbm [thread:$0]  %s159, 128, %s161, [#allocation4]
    $region37: #{tpu_custom_call.1} parent=1 // pred_fallthru
      _
    // Predicated region
    $region38: #{tpu_custom_call.1} parent=1 // pred_check
      _
    $region39: #{tpu_custom_call.1} parent=1 // pred_check_branch
      %165 = sbr.rel (0) target = $region41
    $region40: #{tpu_custom_call.1} parent=1 // pred_region
      %167 = dma.done [#allocation4], 128
    $region41: #{tpu_custom_call.1} parent=1 // pred_fallthru
      _
    %168 = vsyncpa [#allocation3], 1
    %169 = vsyncpa [#allocation6], 1
    %170 = vsyncpa [#allocation9], 1
    %171 = vsyncpa [#allocation4], 1

</llo_original>
